<compile_context>
chip_gen: v7x
topology: tpu7x:2x2x1
jax: 0.10.0
libtpu: 0.0.40
codegen_flags: <defaults>
</compile_context>

<pallas_src>
import functools

import jax
import jax.numpy as jnp
import numpy as np
from jax.experimental import pallas as pl
from jax.experimental.pallas import tpu as pltpu


def _round_up(x, m):
    return ((x + m - 1) // m) * m


def _tpu_generation():
    """Best-effort TPU generation from device_kind; 0 if unknown (falls back to safe defaults)."""
    try:
        kind = jax.devices()[0].device_kind.lower()
    except Exception:
        return 0
    for gen in (7, 6, 5, 4, 3, 2):
        if f"v{gen}" in kind or f"{gen}x" in kind:
            return gen
    return 0


def _pos_embedding_kernel(ids_ref, emb_ref, out_ref, *, GK, GV, count_dtype):
    # ids_ref: (R, GK) int32 -- R packed output rows; each packs G consecutive tokens with K ids
    #          each, already offset by +g*V so they address the block-diagonal table directly.
    # emb_ref: (GV, GD) f32  -- block-diagonal replicated embedding table kron(I_G, E).
    # out_ref: (R, GD) f32   -- G summed token embeddings per row (lane-dense, 128-lane rows).
    ids = ids_ref[...].astype(count_dtype)                # small ints, exact in count_dtype
    R = ids.shape[0]
    iota = jax.lax.broadcasted_iota(jnp.int32, (R, GV), 1).astype(count_dtype)  # hoisted

    # Single merged count accumulator (no per-group lists, no lane concatenate).
    cnt = (ids[:, 0:1] == iota).astype(count_dtype)
    for j in range(1, GK):                                # GK is small & static -> unrolled VPU
        cnt = cnt + (ids[:, j:j + 1] == iota).astype(count_dtype)

    # Embedding lookup + sum over K  ==  counts @ E_blockdiag (MXU), already in packed layout.
    out_ref[...] = jnp.dot(cnt.astype(jnp.float32), emb_ref[...],
                           preferred_element_type=jnp.float32)


def prepare_pos_embedding(emb_table):
    """One-time prep (hoisted out of the per-call path): pad D and build kron(I_G, E)."""
    V, D = emb_table.shape
    emb_table = emb_table.astype(jnp.float32)
    if D >= 128:
        D_pad = _round_up(D, 128)
        G = 1
    else:
        D_pad = pl.next_power_of_2(max(D, 1))             # smallest divisor of 128 that is >= D
        G = 128 // D_pad
    if D_pad != D:
        emb_table = jnp.pad(emb_table, ((0, 0), (0, D_pad - D)))
    emb_bd = emb_table if G == 1 else jnp.kron(jnp.eye(G, dtype=emb_table.dtype), emb_table)
    # TODO(synk): for large vocabularies (V >> 1024) the one-hot/count path should switch to a
    # DMA-gather formulation; fine for POS-tag sized vocabs.
    return {"emb_bd": emb_bd, "V": V, "D": D, "D_pad": D_pad, "G": G}


def pos_embedding_forward(ids_bsk, prepared, *, tile_tokens=8192):
    """ids_bsk: [B, S, K] int32 (ragged id lists padded with padding_idx) -> [B, S, D] float32."""
    emb_bd = prepared["emb_bd"]
    V, D, D_pad, G = prepared["V"], prepared["D"], prepared["D_pad"], prepared["G"]

    B, S, K = ids_bsk.shape
    T = B * S
    GK, GV, GD = G * K, G * V, G * D_pad
    row_align = 8 * G                                     # tokens per 8 packed sublane rows

    gen = _tpu_generation()
    # bf16 count math on v6e/v7x (VALU is the critical unit; bf16 vregs hold 2x the elements).
    # Exactness guard: offset ids (< G*V) and counts (<= K) must be exact bf16 integers (<= 256).
    count_dtype = jnp.bfloat16 if (gen >= 6 and GV <= 256 and K <= 256) else jnp.float32

    # ---- token tile sizing --------------------------------------------------------------------
    tile_t = min(_round_up(tile_tokens, row_align), _round_up(T, row_align))
    tile_t = max(tile_t, row_align)

    # Keep >= 4 grid steps on large inputs: shards the "parallel" axis across v7x's two
    # TensorCores and keeps the ids/out DMAs double-buffered behind compute.
    min_steps = 4
    if T >= min_steps * row_align:
        tile_t = min(tile_t, max(row_align, _round_up(pl.cdiv(T, min_steps), row_align)))

    # Generation-aware VMEM budget (scoped defaults: 16 MiB on v5e, 32 MiB on v6e/v7x).
    budget = (24 if gen >= 6 else 12) * 1024 * 1024

    def _vmem_bytes(tile):
        r = tile // G
        return (2 * r * GK * 4                            # ids tile, double-buffered
                + 2 * r * GD * 4                          # out tile, double-buffered
                + 2 * GV * GD * 4                         # resident block-diagonal table (2 bufs)
                + 3 * r * GV * 4)                         # counts + iota + one-hot temporaries

    while tile_t > row_align and _vmem_bytes(tile_t) > budget:
        tile_t = max(row_align, _round_up(tile_t // 2, row_align))

    phys_cap = (96 if gen in (5, 6) else 48) * 1024 * 1024  # stay well under physical VMEM
    vmem_limit = int(min(max(_vmem_bytes(tile_t) + 8 * 1024 * 1024, 16 * 1024 * 1024), phys_cap))

    # ---- input layout -------------------------------------------------------------------------
    T_pad = _round_up(T, tile_t)
    R_total = T_pad // G
    r_tile = tile_t // G
    grid = (T_pad // tile_t,)

    ids_flat = ids_bsk.reshape(T, K).astype(jnp.int32)
    if T_pad != T:
        # Padded tail tokens look up block-diagonal row g*V + 0; they only touch their own
        # D_pad-wide column slice and those token rows are sliced off below, so this is harmless
        # regardless of padding_idx.
        ids_flat = jnp.pad(ids_flat, ((0, T_pad - T), (0, 0)))
    ids_grouped = ids_flat.reshape(R_total, GK)           # free contiguous reshape
    if G > 1:
        # Fold the block-diagonal row offset (+g*V for group slot g) into the ids here, so the
        # kernel needs a single (R, G*V) accumulator and no concatenate / in-kernel integer divs.
        offs = (np.arange(GK, dtype=np.int32) // K) * V
        ids_grouped = ids_grouped + jnp.asarray(offs)[None, :]

    kernel = functools.partial(_pos_embedding_kernel, GK=GK, GV=GV, count_dtype=count_dtype)

    cost = pl.CostEstimate(
        flops=2 * R_total * GV * GD,
        transcendentals=0,
        bytes_accessed=ids_grouped.size * 4 + emb_bd.size * 4 + R_total * GD * 4,
    )

    out_grouped = pl.pallas_call(
        kernel,
        out_shape=jax.ShapeDtypeStruct((R_total, GD), jnp.float32),
        grid=grid,
        in_specs=[
            pl.BlockSpec((r_tile, GK), lambda i: (i, 0)),
            pl.BlockSpec((GV, GD), lambda i: (0, 0)),     # tiny table stays VMEM-resident
        ],
        out_specs=pl.BlockSpec((r_tile, GD), lambda i: (i, 0)),
        compiler_params=pltpu.CompilerParams(
            dimension_semantics=("parallel",),
            vmem_limit_bytes=vmem_limit,
        ),
        cost_estimate=cost,
    )(ids_grouped, emb_bd)

    # Packed rows hold G consecutive tokens contiguously -> plain reshape, drop padding.
    out_flat = out_grouped.reshape(T_pad, D_pad)[:T, :D]
    return out_flat.reshape(B, S, D)


def make_embedding_table(key, num_embeddings, embedding_dim, padding_idx):
    # torch.nn.Embedding init: N(0, 1); padding_idx row zeroed.
    w = jax.random.normal(key, (num_embeddings, embedding_dim), dtype=jnp.float32)
    w = w.at[padding_idx].set(0.0)
    return w


if __name__ == "__main__":
    # Module config (synthetic, deterministic): Embedding(input_dim, embedding_dim, padding_idx)
    input_dim = 16        # num_embeddings (POS-tag vocab size)
    embedding_dim = 32    # D
    padding_idx = 0

    B, S, K = 2, 8, 3     # batch, tokens per sentence, max POS ids per token

    key = jax.random.PRNGKey(0)
    k_emb, k_ids, k_mask = jax.random.split(key, 3)

    emb_table = make_embedding_table(k_emb, input_dim, embedding_dim, padding_idx)

    # Ragged per-token id lists, padded to K with padding_idx.
    ids = jax.random.randint(k_ids, (B, S, K), minval=1, maxval=input_dim, dtype=jnp.int32)
    keep = jax.random.bernoulli(k_mask, p=0.6, shape=(B, S, K))
    keep = keep.at[:, :, 0].set(True)                    # every token has at least one id
    ids = jnp.where(keep, ids, jnp.int32(padding_idx))   # pad slots -> padding_idx (zero row)

    prepared = prepare_pos_embedding(emb_table)          # hoisted table prep (kron built once)
    out = pos_embedding_forward(ids, prepared)
    out = jax.block_until_ready(out)

    # Pure-JAX reference of the PyTorch semantics: sum of embedded ids per token.
    ref = jnp.take(emb_table, ids, axis=0).sum(axis=2)
    np.testing.assert_allclose(np.asarray(out), np.asarray(ref), rtol=1e-5, atol=1e-5)
    assert out.shape == (B, S, embedding_dim)

    print("KERNEL_OK")
</pallas_src>

<mosaic_0001>
module attributes {stable_mosaic.version = 11 : i64} {
  func.func @_pos_embedding_kernel(%arg0: i32, %arg1: memref<8x12xi32, #tpu.memory_space<vmem>>, %arg2: memref<64x128xf32, #tpu.memory_space<vmem>>, %arg3: memref<8x128xf32, #tpu.memory_space<vmem>>) attributes {dimension_semantics = [#tpu.dimension_semantics<parallel>], iteration_bounds = array<i64: 1>, scalar_prefetch = 0 : i64, scratch_operands = 0 : i64, tpu.core_type = #tpu.core_type<tc>, window_params = [{transform_indices = @transform_0, window_bounds = array<i64: 8, 12>}, {pipeline_mode = #tpu.pipeline_mode<synchronous>, transform_indices = @transform_1, window_bounds = array<i64: 64, 128>}, {transform_indices = @transform_2, window_bounds = array<i64: 8, 128>}]} {
    %c0 = arith.constant 0 : index
    %c0_0 = arith.constant 0 : index
    %0 = vector.load %arg1[%c0, %c0_0] : memref<8x12xi32, #tpu.memory_space<vmem>>, vector<8x12xi32>
    %1 = arith.sitofp %0 : vector<8x12xi32> to vector<8x12xf32>
    %2 = tpu.iota {dimensions = array<i32: 1>} : vector<8x64xi32>
    %3 = arith.sitofp %2 : vector<8x64xi32> to vector<8x64xf32>
    %4 = vector.extract_strided_slice %1 {offsets = [0, 0], sizes = [8, 1], strides = [1, 1]} : vector<8x12xf32> to vector<8x1xf32>
    %5 = vector.broadcast %4 : vector<8x1xf32> to vector<8x64xf32>
    %6 = arith.cmpf oeq, %5, %3 : vector<8x64xf32>
    %7 = arith.extui %6 : vector<8x64xi1> to vector<8x64xi32>
    %8 = arith.sitofp %7 : vector<8x64xi32> to vector<8x64xf32>
    %9 = vector.extract_strided_slice %1 {offsets = [0, 1], sizes = [8, 1], strides = [1, 1]} : vector<8x12xf32> to vector<8x1xf32>
    %10 = vector.broadcast %9 : vector<8x1xf32> to vector<8x64xf32>
    %11 = arith.cmpf oeq, %10, %3 : vector<8x64xf32>
    %12 = arith.extui %11 : vector<8x64xi1> to vector<8x64xi32>
    %13 = arith.sitofp %12 : vector<8x64xi32> to vector<8x64xf32>
    %14 = arith.addf %8, %13 : vector<8x64xf32>
    %15 = vector.extract_strided_slice %1 {offsets = [0, 2], sizes = [8, 1], strides = [1, 1]} : vector<8x12xf32> to vector<8x1xf32>
    %16 = vector.broadcast %15 : vector<8x1xf32> to vector<8x64xf32>
    %17 = arith.cmpf oeq, %16, %3 : vector<8x64xf32>
    %18 = arith.extui %17 : vector<8x64xi1> to vector<8x64xi32>
    %19 = arith.sitofp %18 : vector<8x64xi32> to vector<8x64xf32>
    %20 = arith.addf %14, %19 : vector<8x64xf32>
    %21 = vector.extract_strided_slice %1 {offsets = [0, 3], sizes = [8, 1], strides = [1, 1]} : vector<8x12xf32> to vector<8x1xf32>
    %22 = vector.broadcast %21 : vector<8x1xf32> to vector<8x64xf32>
    %23 = arith.cmpf oeq, %22, %3 : vector<8x64xf32>
    %24 = arith.extui %23 : vector<8x64xi1> to vector<8x64xi32>
    %25 = arith.sitofp %24 : vector<8x64xi32> to vector<8x64xf32>
    %26 = arith.addf %20, %25 : vector<8x64xf32>
    %27 = vector.extract_strided_slice %1 {offsets = [0, 4], sizes = [8, 1], strides = [1, 1]} : vector<8x12xf32> to vector<8x1xf32>
    %28 = vector.broadcast %27 : vector<8x1xf32> to vector<8x64xf32>
    %29 = arith.cmpf oeq, %28, %3 : vector<8x64xf32>
    %30 = arith.extui %29 : vector<8x64xi1> to vector<8x64xi32>
    %31 = arith.sitofp %30 : vector<8x64xi32> to vector<8x64xf32>
    %32 = arith.addf %26, %31 : vector<8x64xf32>
    %33 = vector.extract_strided_slice %1 {offsets = [0, 5], sizes = [8, 1], strides = [1, 1]} : vector<8x12xf32> to vector<8x1xf32>
    %34 = vector.broadcast %33 : vector<8x1xf32> to vector<8x64xf32>
    %35 = arith.cmpf oeq, %34, %3 : vector<8x64xf32>
    %36 = arith.extui %35 : vector<8x64xi1> to vector<8x64xi32>
    %37 = arith.sitofp %36 : vector<8x64xi32> to vector<8x64xf32>
    %38 = arith.addf %32, %37 : vector<8x64xf32>
    %39 = vector.extract_strided_slice %1 {offsets = [0, 6], sizes = [8, 1], strides = [1, 1]} : vector<8x12xf32> to vector<8x1xf32>
    %40 = vector.broadcast %39 : vector<8x1xf32> to vector<8x64xf32>
    %41 = arith.cmpf oeq, %40, %3 : vector<8x64xf32>
    %42 = arith.extui %41 : vector<8x64xi1> to vector<8x64xi32>
    %43 = arith.sitofp %42 : vector<8x64xi32> to vector<8x64xf32>
    %44 = arith.addf %38, %43 : vector<8x64xf32>
    %45 = vector.extract_strided_slice %1 {offsets = [0, 7], sizes = [8, 1], strides = [1, 1]} : vector<8x12xf32> to vector<8x1xf32>
    %46 = vector.broadcast %45 : vector<8x1xf32> to vector<8x64xf32>
    %47 = arith.cmpf oeq, %46, %3 : vector<8x64xf32>
    %48 = arith.extui %47 : vector<8x64xi1> to vector<8x64xi32>
    %49 = arith.sitofp %48 : vector<8x64xi32> to vector<8x64xf32>
    %50 = arith.addf %44, %49 : vector<8x64xf32>
    %51 = vector.extract_strided_slice %1 {offsets = [0, 8], sizes = [8, 1], strides = [1, 1]} : vector<8x12xf32> to vector<8x1xf32>
    %52 = vector.broadcast %51 : vector<8x1xf32> to vector<8x64xf32>
    %53 = arith.cmpf oeq, %52, %3 : vector<8x64xf32>
    %54 = arith.extui %53 : vector<8x64xi1> to vector<8x64xi32>
    %55 = arith.sitofp %54 : vector<8x64xi32> to vector<8x64xf32>
    %56 = arith.addf %50, %55 : vector<8x64xf32>
    %57 = vector.extract_strided_slice %1 {offsets = [0, 9], sizes = [8, 1], strides = [1, 1]} : vector<8x12xf32> to vector<8x1xf32>
    %58 = vector.broadcast %57 : vector<8x1xf32> to vector<8x64xf32>
    %59 = arith.cmpf oeq, %58, %3 : vector<8x64xf32>
    %60 = arith.extui %59 : vector<8x64xi1> to vector<8x64xi32>
    %61 = arith.sitofp %60 : vector<8x64xi32> to vector<8x64xf32>
    %62 = arith.addf %56, %61 : vector<8x64xf32>
    %63 = vector.extract_strided_slice %1 {offsets = [0, 10], sizes = [8, 1], strides = [1, 1]} : vector<8x12xf32> to vector<8x1xf32>
    %64 = vector.broadcast %63 : vector<8x1xf32> to vector<8x64xf32>
    %65 = arith.cmpf oeq, %64, %3 : vector<8x64xf32>
    %66 = arith.extui %65 : vector<8x64xi1> to vector<8x64xi32>
    %67 = arith.sitofp %66 : vector<8x64xi32> to vector<8x64xf32>
    %68 = arith.addf %62, %67 : vector<8x64xf32>
    %69 = vector.extract_strided_slice %1 {offsets = [0, 11], sizes = [8, 1], strides = [1, 1]} : vector<8x12xf32> to vector<8x1xf32>
    %70 = vector.broadcast %69 : vector<8x1xf32> to vector<8x64xf32>
    %71 = arith.cmpf oeq, %70, %3 : vector<8x64xf32>
    %72 = arith.extui %71 : vector<8x64xi1> to vector<8x64xi32>
    %73 = arith.sitofp %72 : vector<8x64xi32> to vector<8x64xf32>
    %74 = arith.addf %68, %73 : vector<8x64xf32>
    %c0_1 = arith.constant 0 : index
    %c0_2 = arith.constant 0 : index
    %75 = vector.load %arg2[%c0_1, %c0_2] : memref<64x128xf32, #tpu.memory_space<vmem>>, vector<64x128xf32>
    %cst = arith.constant dense<0.000000e+00> : vector<8x128xf32>
    %76 = tpu.matmul %74, %75, %cst {dimension_numbers = #tpu.dot_dimension_numbers<[1], [0], [0], [1], [0, 0, 1, 1], [], []>} : vector<8x64xf32>, vector<64x128xf32>, vector<8x128xf32> -> vector<8x128xf32>
    %c0_3 = arith.constant 0 : index
    %c0_4 = arith.constant 0 : index
    %77 = vector.load %arg3[%c0_3, %c0_4] : memref<8x128xf32, #tpu.memory_space<vmem>>, vector<8x128xf32>
    tpu.vector_store %arg3[%c0_3, %c0_4], %76 {strides = array<i32>} : memref<8x128xf32, #tpu.memory_space<vmem>>, vector<8x128xf32>,
    return
  }
  func.func @transform_0(%arg0: i32) -> (i32, i32) {
    %c0_i32 = arith.constant 0 : i32
    %c0_i32_0 = arith.constant 0 : i32
    return %arg0, %c0_i32 : i32, i32
  }
  func.func @transform_1(%arg0: i32) -> (i32, i32) {
    %c0_i32 = arith.constant 0 : i32
    %c0_i32_0 = arith.constant 0 : i32
    %c0_i32_1 = arith.constant 0 : i32
    return %c0_i32, %c0_i32_0 : i32, i32
  }
  func.func @transform_2(%arg0: i32) -> (i32, i32) {
    %c0_i32 = arith.constant 0 : i32
    %c0_i32_0 = arith.constant 0 : i32
    return %arg0, %c0_i32 : i32, i32
  }
}

</mosaic_0001>

<llo_original>
// kernel: tpu_custom_call.1
$region0: #{tpu_custom_call.1}
  #allocation0 [shape = 'u32[]', space=smem, size = 0x4, offset = 0x4, fixed_abs, tag = 'smem constant byte address 0x4 - core index']
  #allocation1 [shape = 'u32[144,128]{1,0:T(1,128)}', space=vmem, size = 0x12000, scoped, tag = 'internal scratch']
  %s0 = inlined_call_operand.hbm [shape: s32[8,12], index: 0, kind: input, shape index: {}]
  %s1 = inlined_call_operand.hbm [shape: f32[64,128], index: 1, kind: input, shape index: {}]
  %s2 = inlined_call_operand.hbm [shape: f32[8,128], index: 2, kind: output, shape index: {}]
  %s3 = sld [smem:[#allocation0]]
  $region26: #{tpu_custom_call.1} parent=0
    _
  %s5 = ssub.s32 1, %s3
  %s6 = scalar_select 0, %s5, %s3
  $region1: #{tpu_custom_call.1} parent=0
    #allocation2 [shape = 'u8[4096]{0}', space=vmem, size = 0x1000, scoped, tag = 'input window, operand 0, single buffered']
    #allocation3 [shape = 's32[1]{0}', space=sflag, size = 0x4, scoped, tag = 'scoped memory for tpu_custom_call.1']
    #allocation4 [shape = 's32[1]{0}', space=sflag, size = 0x4, scoped, tag = 'scoped memory for tpu_custom_call.1']
    #allocation5 [shape = 'u8[32768]{0}', space=vmem, size = 0x8000, scoped, tag = 'input window, operand 1, single buffered']
    #allocation6 [shape = 's32[1]{0}', space=sflag, size = 0x4, scoped, tag = 'scoped memory for tpu_custom_call.1']
    #allocation7 [shape = 'u8[4096]{0}', space=vmem, size = 0x1000, scoped, tag = 'output window, operand 0, single buffered']
    %7 = vsyncpa [#allocation3], 0
    %8 = vsyncpa [#allocation6], 0
    %9 = vsyncpa [#allocation4], 0
    // Predicated region
    $region2: #{tpu_custom_call.1} parent=1 // pred_check
      _
    $region3: #{tpu_custom_call.1} parent=1 // pred_check_branch
      %11 = sbr.rel (0) target = $region5
    $region4: #{tpu_custom_call.1} parent=1 // pred_region
      %s13 = ssub.s32 128, 128
      %14 = vsyncadd [#allocation3], %s13
      %s16 = sshll.u32 [#allocation2], 4
      %s17 = int_to_ptr.vmem [resolvable:$true] %s16
      %19 = dma.hbm_to_vmem [thread:$0]  %s0, 128, %s17, [#allocation3]
    $region5: #{tpu_custom_call.1} parent=1 // pred_fallthru
      _
    // Predicated region
    $region6: #{tpu_custom_call.1} parent=1 // pred_check
      _
    $region7: #{tpu_custom_call.1} parent=1 // pred_check_branch
      %21 = sbr.rel (0) target = $region9
    $region8: #{tpu_custom_call.1} parent=1 // pred_region
      %s23 = ssub.s32 1024, 1024
      %24 = vsyncadd [#allocation6], %s23
      %s25 = sshll.u32 [#allocation5], 4
      %s26 = int_to_ptr.vmem [resolvable:$true] %s25
      %31 = dma.hbm_to_vmem [thread:$0]  %s1, 1024, %s26, [#allocation6], 128, 128, 8
    $region9: #{tpu_custom_call.1} parent=1 // pred_fallthru
      _
    // Predicated region
    $region10: #{tpu_custom_call.1} parent=1 // pred_check
      _
    $region11: #{tpu_custom_call.1} parent=1 // pred_check_branch
      %33 = sbr.rel (0) target = $region13
    $region12: #{tpu_custom_call.1} parent=1 // pred_region
      %34 = dma.done [#allocation3], 128
    $region13: #{tpu_custom_call.1} parent=1 // pred_fallthru
      _
    // Predicated region
    $region14: #{tpu_custom_call.1} parent=1 // pred_check
      _
    $region15: #{tpu_custom_call.1} parent=1 // pred_check_branch
      %36 = sbr.rel (0) target = $region17
    $region16: #{tpu_custom_call.1} parent=1 // pred_region
      %37 = dma.done [#allocation6], 1024
    $region17: #{tpu_custom_call.1} parent=1 // pred_fallthru
      _
    %v38 = vld [vmem:[#allocation2] sm:$0xff]
    %v39 = vcvt.s32.f32 %v38
    %v40 = vlaneseq
    %v41 = vand.u32 %v40, 127
    %v42 = vcvt.s32.f32 %v41
    %44 = vset.pattern.permute.xlu0 0
    %45 = vperm.xlu0 %44, %v39
    %v46 = vpop.permute.xlu0 %45
    %vm48 = vcmp.eq.f32.partialorder %v46, %v42
    %v49 = vsel %vm48, 1, 0
    %v50 = vcvt.s32.f32 %v49
    %51 = vset.pattern.permute.xlu0 1
    %52 = vperm.xlu0 %51, %v39
    %v53 = vpop.permute.xlu0 %52
    %vm55 = vcmp.eq.f32.partialorder %v53, %v42
    %v56 = vsel %vm55, 1, 0
    %v57 = vcvt.s32.f32 %v56
    %v58 = vadd.f32 %v50, %v57
    %59 = vset.pattern.permute.xlu0 2
    %60 = vperm.xlu0 %59, %v39
    %v61 = vpop.permute.xlu0 %60
    %vm63 = vcmp.eq.f32.partialorder %v61, %v42
    %v64 = vsel %vm63, 1, 0
    %v65 = vcvt.s32.f32 %v64
    %v66 = vadd.f32 %v58, %v65
    %67 = vset.pattern.permute.xlu0 3
    %68 = vperm.xlu0 %67, %v39
    %v69 = vpop.permute.xlu0 %68
    %vm71 = vcmp.eq.f32.partialorder %v69, %v42
    %v72 = vsel %vm71, 1, 0
    %v73 = vcvt.s32.f32 %v72
    %v74 = vadd.f32 %v66, %v73
    %75 = vset.pattern.permute.xlu0 4
    %76 = vperm.xlu0 %75, %v39
    %v77 = vpop.permute.xlu0 %76
    %vm79 = vcmp.eq.f32.partialorder %v77, %v42
    %v80 = vsel %vm79, 1, 0
    %v81 = vcvt.s32.f32 %v80
    %v82 = vadd.f32 %v74, %v81
    %83 = vset.pattern.permute.xlu0 5
    %84 = vperm.xlu0 %83, %v39
    %v85 = vpop.permute.xlu0 %84
    %vm87 = vcmp.eq.f32.partialorder %v85, %v42
    %v88 = vsel %vm87, 1, 0
    %v89 = vcvt.s32.f32 %v88
    %v90 = vadd.f32 %v82, %v89
    %91 = vset.pattern.permute.xlu0 6
    %92 = vperm.xlu0 %91, %v39
    %v93 = vpop.permute.xlu0 %92
    %vm95 = vcmp.eq.f32.partialorder %v93, %v42
    %v96 = vsel %vm95, 1, 0
    %v97 = vcvt.s32.f32 %v96
    %v98 = vadd.f32 %v90, %v97
    %99 = vset.pattern.permute.xlu0 7
    %100 = vperm.xlu0 %99, %v39
    %v101 = vpop.permute.xlu0 %100
    %vm103 = vcmp.eq.f32.partialorder %v101, %v42
    %v104 = vsel %vm103, 1, 0
    %v105 = vcvt.s32.f32 %v104
    %v106 = vadd.f32 %v98, %v105
    %107 = vset.pattern.permute.xlu0 8
    %108 = vperm.xlu0 %107, %v39
    %v109 = vpop.permute.xlu0 %108
    %vm111 = vcmp.eq.f32.partialorder %v109, %v42
    %v112 = vsel %vm111, 1, 0
    %v113 = vcvt.s32.f32 %v112
    %v114 = vadd.f32 %v106, %v113
    %115 = vset.pattern.permute.xlu0 9
    %116 = vperm.xlu0 %115, %v39
    %v117 = vpop.permute.xlu0 %116
    %vm119 = vcmp.eq.f32.partialorder %v117, %v42
    %v120 = vsel %vm119, 1, 0
    %v121 = vcvt.s32.f32 %v120
    %v122 = vadd.f32 %v114, %v121
    %123 = vset.pattern.permute.xlu0 10
    %124 = vperm.xlu0 %123, %v39
    %v125 = vpop.permute.xlu0 %124
    %vm127 = vcmp.eq.f32.partialorder %v125, %v42
    %v128 = vsel %vm127, 1, 0
    %v129 = vcvt.s32.f32 %v128
    %v130 = vadd.f32 %v122, %v129
    %131 = vset.pattern.permute.xlu0 11
    %132 = vperm.xlu0 %131, %v39
    %v133 = vpop.permute.xlu0 %132
    %vm135 = vcmp.eq.f32.partialorder %v133, %v42
    %v136 = vsel %vm135, 1, 0
    %v137 = vcvt.s32.f32 %v136
    %v138 = vadd.f32 %v130, %v137
    %v139 = vld [vmem:[#allocation5] sm:$0xff]
    %v140 = vld [vmem:[#allocation5 + $0x8] sm:$0xff]
    %v141 = vld [vmem:[#allocation5 + $0x10] sm:$0xff]
    %v142 = vld [vmem:[#allocation5 + $0x18] sm:$0xff]
    %v143 = vld [vmem:[#allocation5 + $0x20] sm:$0xff]
    %v144 = vld [vmem:[#allocation5 + $0x28] sm:$0xff]
    %v145 = vld [vmem:[#allocation5 + $0x30] sm:$0xff]
    %v146 = vld [vmem:[#allocation5 + $0x38] sm:$0xff]
    %vm147 = vcmask 523264
    %v149 = vsel %vm147, %v138, 0
    %151 = vmatprep.subr.mxu0 0.0
    %152 = vmatpush1.msra.mxu0 %v139
    %153 = vmatprep.subr.mxu0 0.0
    %154 = vmatpush1.msra.mxu0 %v140
    %155 = vmatprep.subr.mxu0 0.0
    %156 = vmatpush1.msra.mxu0 %v141
    %157 = vmatprep.subr.mxu0 0.0
    %158 = vmatpush1.msra.mxu0 %v142
    %159 = vmatprep.subr.mxu0 0.0
    %160 = vmatpush1.msra.mxu0 %v143
    %161 = vmatprep.subr.mxu0 0.0
    %162 = vmatpush1.msra.mxu0 %v144
    %163 = vmatprep.subr.mxu0 0.0
    %164 = vmatpush1.msra.mxu0 %v145
    %165 = vmatprep.subr.mxu0 0.0
    %166 = vmatpush1.msra.mxu0 %v146
    %167 = vmatprep.subr.mxu0 0.0
    %168 = vmatpush1.msra.mxu0 0.0
    %169 = vmatprep.subr.mxu0 0.0
    %170 = vmatpush1.msra.mxu0 0.0
    %171 = vmatprep.subr.mxu0 0.0
    %172 = vmatpush1.msra.mxu0 0.0
    %173 = vmatprep.subr.mxu0 0.0
    %174 = vmatpush1.msra.mxu0 0.0
    %175 = vmatprep.subr.mxu0 0.0
    %176 = vmatpush1.msra.mxu0 0.0
    %177 = vmatprep.subr.mxu0 0.0
    %178 = vmatpush1.msra.mxu0 0.0
    %179 = vmatprep.subr.mxu0 0.0
    %180 = vmatpush1.msra.mxu0 0.0
    %181 = vmatprep.subr.mxu0 0.0
    %182 = vmatpush1.msra.mxu0 0.0
    %183 = vmatprep.subr.mxu0 0.0
    %184 = vmatpush1.msra.mxu0 0.0
    %185 = vmatprep.subr.mxu0 0.0
    %186 = vmatpush1.msra.mxu0 0.0
    %187 = vmatprep.subr.mxu0 0.0
    %188 = vmatpush1.msra.mxu0 0.0
    %189 = vmatprep.subr.mxu0 0.0
    %190 = vmatpush1.msra.mxu0 0.0
    %191 = vmatprep.subr.mxu0 0.0
    %192 = vmatpush1.msra.mxu0 0.0
    %193 = vmatprep.subr.mxu0 0.0
    %194 = vmatpush1.msra.mxu0 0.0
    %195 = vmatprep.subr.mxu0 0.0
    %196 = vmatpush1.msra.mxu0 0.0
    %197 = vmatprep.subr.mxu0 0.0
    %198 = vmatpush1.msra.mxu0 0.0
    %199 = vmatprep.subr.mxu0 0.0
    %200 = vmatpush1.msra.mxu0 0.0
    %201 = vmatprep.subr.mxu0 0.0
    %202 = vmatpush1.msra.mxu0 0.0
    %203 = vmatprep.subr.mxu0 0.0
    %204 = vmatpush1.msra.mxu0 0.0
    %205 = vmatprep.subr.mxu0 0.0
    %206 = vmatpush1.msra.mxu0 0.0
    %207 = vmatprep.subr.mxu0 0.0
    %208 = vmatpush1.msra.mxu0 0.0
    %209 = vmatprep.subr.mxu0 0.0
    %210 = vmatpush1.msra.mxu0 0.0
    %211 = vmatprep.subr.mxu0 0.0
    %212 = vmatpush1.msra.mxu0 0.0
    %213 = vmatprep.subr.mxu0 0.0
    %214 = vmatpush1.msra.mxu0 0.0
    %215 = vmatprep.mubr.f32.mxu0 0.0
    %216 = vmatmul.mubr.f32.gmra.mrb[0].mxu0 %v149
    %v217 = vpop.f32.mrb[0].mxu0
    %v218 = vadd.f32 0.0, %v217
    %v219 = vpop.f32.mrb[0].mxu0
    %220 = vdwg.mxu0
    %221 = vst [vmem:[#allocation7] sm:$0xff] %v218
    // Predicated region
    $region18: #{tpu_custom_call.1} parent=1 // pred_check
      _
    $region19: #{tpu_custom_call.1} parent=1 // pred_check_branch
      %223 = sbr.rel (0) target = $region21
    $region20: #{tpu_custom_call.1} parent=1 // pred_region
      %s225 = ssub.s32 128, 128
      %226 = vsyncadd [#allocation4], %s225
      %s228 = sshll.u32 [#allocation7], 4
      %s229 = int_to_ptr.vmem [resolvable:$true] %s228
      %231 = dma.vmem_to_hbm [thread:$0]  %s229, 128, %s2, [#allocation4]
    $region21: #{tpu_custom_call.1} parent=1 // pred_fallthru
      _
    // Predicated region
    $region22: #{tpu_custom_call.1} parent=1 // pred_check
      _
    $region23: #{tpu_custom_call.1} parent=1 // pred_check_branch
      %233 = sbr.rel (0) target = $region25
    $region24: #{tpu_custom_call.1} parent=1 // pred_region
      %234 = dma.done [#allocation4], 128
    $region25: #{tpu_custom_call.1} parent=1 // pred_fallthru
      _
    %235 = vsyncpa [#allocation3], 1
    %236 = vsyncpa [#allocation6], 1
    %237 = vsyncpa [#allocation4], 1

</llo_original>
